<compile_context>
chip_gen: v7x
topology: tpu7x:2x2x1
jax: 0.10.0
libtpu: 0.0.40
codegen_flags: <defaults>
</compile_context>

<pallas_src>
import jax
import jax.numpy as jnp
from jax.experimental import pallas as pl
from jax.experimental.pallas import tpu as pltpu

BN_EPS = 1e-5
_VMEM_LIMIT_BYTES = 48 * 1024 * 1024  # explicit scoped-VMEM cap; tiles sized well under this


# ----------------------------- kernel helpers -----------------------------

def _conv3_im2col(h, w2d):
    """'same' 1D conv (k=3, pad=1, no bias) as a single matmul.

    h:   (L, Cin)       channels-last activation tile
    w2d: (3*Cin, Cout)  row index = k*Cin + c  <->  torch weight w[o, c, k]
    """
    L, C = h.shape
    zrow = jnp.zeros((1, C), dtype=h.dtype)
    prev = jnp.concatenate([zrow, h[:L - 1, :]], axis=0)   # x[l-1]  (tap k=0)
    nxt = jnp.concatenate([h[1:, :], zrow], axis=0)        # x[l+1]  (tap k=2)
    cols = jnp.concatenate([prev, h, nxt], axis=1)         # (L, 3*Cin)
    return jnp.dot(cols, w2d, preferred_element_type=jnp.float32)
    # NOTE: casting `cols`/`w2d` to bf16 (keeping f32 accumulation) would double MXU rate on
    # v6e/v7x; kept f32 here for strict parity with the PyTorch reference.


def _channel_stats(y):
    """Per-tile per-channel partial [sum; sum of squares] -> (2, C)."""
    return jnp.concatenate(
        [jnp.sum(y, axis=0, keepdims=True),
         jnp.sum(y * y, axis=0, keepdims=True)], axis=0)


# ----------------------------- kernels -----------------------------

def _pool_conv1_kernel(x_ref, w1_ref, y1_ref, s1_ref):
    # x_ref: (Cin, 2*Lh) -- one batch element, torch NCL layout.
    x = x_ref[...]
    xt = x.T                                        # (2*Lh, Cin): channels on lanes
    two_lh, cin = xt.shape
    lh = two_lh // 2
    xp = jnp.max(xt.reshape(lh, 2, cin), axis=1)    # MaxPool1d(kernel_size=2)
    y = _conv3_im2col(xp, w1_ref[...])              # (Lh, Cmid), pre-BN (bias cancelled by BN)
    y1_ref[...] = y
    s1_ref[...] = _channel_stats(y)


def _bn_relu_conv2_kernel(y1_ref, sc1_ref, sh1_ref, w2_ref, y2_ref, s2_ref):
    # BN1 folded to one fused multiply-add, then ReLU, then conv2 as one im2col matmul.
    h = jnp.maximum(y1_ref[...] * sc1_ref[...] + sh1_ref[...], 0.0)
    y = _conv3_im2col(h, w2_ref[...])               # (Lh, Cout), pre-BN
    y2_ref[...] = y
    s2_ref[...] = _channel_stats(y)


def _bn_relu_out_kernel(y2_ref, sc2_ref, sh2_ref, o_ref):
    z = jnp.maximum(y2_ref[...] * sc2_ref[...] + sh2_ref[...], 0.0)
    # Store directly in torch NCL layout: length on the lane axis -> lane-dense stores.
    o_ref[...] = z.T.astype(o_ref.dtype)


# ----------------------------- wrapper -----------------------------

def _bn_scale_shift(stats, gamma, beta, n):
    """Fold training-mode BN into per-channel scale/shift from partial (sum, sumsq)."""
    s = jnp.sum(stats[:, 0, :], axis=0)
    ss = jnp.sum(stats[:, 1, :], axis=0)
    mean = s / n
    var = jnp.maximum(ss / n - mean * mean, 0.0)     # biased variance (BN training mode)
    scale = gamma * jax.lax.rsqrt(var + BN_EPS)
    shift = beta - mean * scale
    return scale.reshape(1, -1), shift.reshape(1, -1)


def downsample_forward(x_ncl, params):
    """x_ncl: (B, Cin, L) float32, torch NCL layout. Returns (B, Cout, L // 2)."""
    w1, b1, g1, be1, w2, b2, g2, be2 = params
    del b1, b2  # conv biases are exactly cancelled by the training-mode BN mean subtraction
    B, Cin, L = x_ncl.shape
    Lh = L // 2
    Cmid = w1.shape[0]
    Cout = w2.shape[0]

    x = x_ncl[:, :, :2 * Lh].astype(jnp.float32)     # guard odd L (torch MaxPool1d floors)
    # torch conv weight (Cout, Cin, K) -> im2col matrix (K*Cin, Cout), row index = k*Cin + c
    w1_2d = jnp.transpose(w1, (2, 1, 0)).reshape(3 * Cin, Cmid).astype(jnp.float32)
    w2_2d = jnp.transpose(w2, (2, 1, 0)).reshape(3 * Cmid, Cout).astype(jnp.float32)

    cparams = pltpu.CompilerParams(
        dimension_semantics=("parallel",),            # shard batch tiles across TCs (v7x)
        vmem_limit_bytes=_VMEM_LIMIT_BYTES)

    # ---- pass 1: maxpool + conv1 + batch-stat partials ----
    y1, s1 = pl.pallas_call(
        _pool_conv1_kernel,
        out_shape=(jax.ShapeDtypeStruct((B, Lh, Cmid), jnp.float32),
                   jax.ShapeDtypeStruct((B, 2, Cmid), jnp.float32)),
        grid=(B,),
        in_specs=[pl.BlockSpec((None, Cin, 2 * Lh), lambda b: (b, 0, 0)),
                  pl.BlockSpec((3 * Cin, Cmid), lambda b: (0, 0))],
        out_specs=(pl.BlockSpec((None, Lh, Cmid), lambda b: (b, 0, 0)),
                   pl.BlockSpec((None, 2, Cmid), lambda b: (b, 0, 0))),
        compiler_params=cparams,
    )(x, w1_2d)

    n = jnp.float32(B * Lh)
    sc1, sh1 = _bn_scale_shift(s1, g1.astype(jnp.float32), be1.astype(jnp.float32), n)

    # ---- pass 2: BN1 + ReLU + conv2 + batch-stat partials ----
    y2, s2 = pl.pallas_call(
        _bn_relu_conv2_kernel,
        out_shape=(jax.ShapeDtypeStruct((B, Lh, Cout), jnp.float32),
                   jax.ShapeDtypeStruct((B, 2, Cout), jnp.float32)),
        grid=(B,),
        in_specs=[pl.BlockSpec((None, Lh, Cmid), lambda b: (b, 0, 0)),
                  pl.BlockSpec((1, Cmid), lambda b: (0, 0)),
                  pl.BlockSpec((1, Cmid), lambda b: (0, 0)),
                  pl.BlockSpec((3 * Cmid, Cout), lambda b: (0, 0))],
        out_specs=(pl.BlockSpec((None, Lh, Cout), lambda b: (b, 0, 0)),
                   pl.BlockSpec((None, 2, Cout), lambda b: (b, 0, 0))),
        compiler_params=cparams,
    )(y1, sc1, sh1, w2_2d)

    sc2, sh2 = _bn_scale_shift(s2, g2.astype(jnp.float32), be2.astype(jnp.float32), n)

    # ---- pass 3: BN2 + ReLU, write final NCL output ----
    out = pl.pallas_call(
        _bn_relu_out_kernel,
        out_shape=jax.ShapeDtypeStruct((B, Cout, Lh), jnp.float32),
        grid=(B,),
        in_specs=[pl.BlockSpec((None, Lh, Cout), lambda b: (b, 0, 0)),
                  pl.BlockSpec((1, Cout), lambda b: (0, 0)),
                  pl.BlockSpec((1, Cout), lambda b: (0, 0))],
        out_specs=pl.BlockSpec((None, Cout, Lh), lambda b: (b, 0, 0)),
        compiler_params=cparams,
    )(y2, sc2, sh2)

    return out


# ----------------------------- params / reference / test -----------------------------

def init_params(key, in_channels, out_channels):
    mid_channels = out_channels  # DoubleConv default: mid = out
    k1, k2, k3, k4 = jax.random.split(key, 4)
    w1 = 0.1 * jax.random.normal(k1, (mid_channels, in_channels, 3), jnp.float32)
    b1 = 0.1 * jax.random.normal(k2, (mid_channels,), jnp.float32)
    w2 = 0.1 * jax.random.normal(k3, (out_channels, mid_channels, 3), jnp.float32)
    b2 = 0.1 * jax.random.normal(k4, (out_channels,), jnp.float32)
    g1 = jnp.ones((mid_channels,), jnp.float32)
    be1 = jnp.zeros((mid_channels,), jnp.float32)
    g2 = jnp.ones((out_channels,), jnp.float32)
    be2 = jnp.zeros((out_channels,), jnp.float32)
    return (w1, b1, g1, be1, w2, b2, g2, be2)


def downsample_ref(x_ncl, params):
    """Pure-JAX reference mirroring the torch module (training-mode BN, with conv bias)."""
    w1, b1, g1, be1, w2, b2, g2, be2 = params
    B, Cin, L = x_ncl.shape
    Lh = L // 2
    x = x_ncl[:, :, :2 * Lh].astype(jnp.float32)
    xp = jnp.max(x.reshape(B, Cin, Lh, 2), axis=-1)   # MaxPool1d(2)

    def conv_bn_relu(h, w, b, g, be):
        y = jax.lax.conv_general_dilated(
            h, w.astype(jnp.float32), window_strides=(1,), padding=((1, 1),),
            dimension_numbers=("NCH", "OIH", "NCH")) + b[None, :, None]
        mean = jnp.mean(y, axis=(0, 2), keepdims=True)
        var = jnp.mean((y - mean) ** 2, axis=(0, 2), keepdims=True)
        z = (y - mean) * jax.lax.rsqrt(var + BN_EPS) * g[None, :, None] + be[None, :, None]
        return jnp.maximum(z, 0.0)

    h1 = conv_bn_relu(xp, w1, b1, g1, be1)
    return conv_bn_relu(h1, w2, b2, g2, be2)


if __name__ == "__main__":
    B, C_IN, C_OUT, L = 2, 4, 8, 16
    key = jax.random.PRNGKey(0)
    kx, kp = jax.random.split(key)
    x = jax.random.normal(kx, (B, C_IN, L), jnp.float32)   # NCL, like torch Conv1d input
    params = init_params(kp, C_IN, C_OUT)

    out = jax.block_until_ready(jax.jit(downsample_forward)(x, params))
    assert out.shape == (B, C_OUT, L // 2), out.shape

    ref = jax.block_until_ready(downsample_ref(x, params))
    err = float(jnp.max(jnp.abs(out - ref)))
    assert err < 1e-3, f"max abs err vs reference = {err}"
    print("KERNEL_OK")
</pallas_src>

<mosaic_0001>
module attributes {stable_mosaic.version = 11 : i64} {
  func.func @_pool_conv1_kernel(%arg0: i32, %arg1: memref<1x4x16xf32, #tpu.memory_space<vmem>>, %arg2: memref<12x8xf32, #tpu.memory_space<vmem>>, %arg3: memref<1x8x8xf32, #tpu.memory_space<vmem>>, %arg4: memref<1x2x8xf32, #tpu.memory_space<vmem>>) attributes {dimension_semantics = [#tpu.dimension_semantics<parallel>], iteration_bounds = array<i64: 2>, scalar_prefetch = 0 : i64, scratch_operands = 0 : i64, tpu.core_type = #tpu.core_type<tc>, window_params = [{transform_indices = @transform_0, window_bounds = array<i64: 1, 4, 16>}, {pipeline_mode = #tpu.pipeline_mode<synchronous>, transform_indices = @transform_1, window_bounds = array<i64: 12, 8>}, {transform_indices = @transform_2, window_bounds = array<i64: 1, 8, 8>}, {transform_indices = @transform_3, window_bounds = array<i64: 1, 2, 8>}]} {
    %c0 = arith.constant 0 : index
    %c0_0 = arith.constant 0 : index
    %c0_1 = arith.constant 0 : index
    %0 = vector.load %arg1[%c0, %c0_0, %c0_1] : memref<1x4x16xf32, #tpu.memory_space<vmem>>, vector<1x4x16xf32>
    %1 = vector.shape_cast %0 : vector<1x4x16xf32> to vector<4x16xf32>
    %2 = tpu.transpose %1, [1, 0] : vector<4x16xf32> -> vector<16x4xf32>
    %3 = vector.shape_cast %2 : vector<16x4xf32> to vector<8x2x4xf32>
    %cst = arith.constant dense<0xFF800000> : vector<8x4xf32>
    %4 = vector.multi_reduction <maximumf>, %3, %cst [1] : vector<8x2x4xf32> to vector<8x4xf32>
    %c0_2 = arith.constant 0 : index
    %c0_3 = arith.constant 0 : index
    %5 = vector.load %arg2[%c0_2, %c0_3] : memref<12x8xf32, #tpu.memory_space<vmem>>, vector<12x8xf32>
    %cst_4 = arith.constant 0.000000e+00 : f32
    %6 = vector.broadcast %cst_4 : f32 to vector<1x4xf32>
    %7 = vector.extract_strided_slice %4 {offsets = [0, 0], sizes = [7, 4], strides = [1, 1]} : vector<8x4xf32> to vector<7x4xf32>
    %8 = tpu.concatenate %6, %7 in 0 : vector<1x4xf32>, vector<7x4xf32> -> vector<8x4xf32>
    %9 = vector.extract_strided_slice %4 {offsets = [1, 0], sizes = [7, 4], strides = [1, 1]} : vector<8x4xf32> to vector<7x4xf32>
    %10 = tpu.concatenate %9, %6 in 0 : vector<7x4xf32>, vector<1x4xf32> -> vector<8x4xf32>
    %11 = tpu.concatenate %8, %4, %10 in 1 : vector<8x4xf32>, vector<8x4xf32>, vector<8x4xf32> -> vector<8x12xf32>
    %cst_5 = arith.constant dense<0.000000e+00> : vector<8x8xf32>
    %12 = tpu.matmul %11, %5, %cst_5 {dimension_numbers = #tpu.dot_dimension_numbers<[1], [0], [0], [1], [0, 0, 1, 1], [], []>} : vector<8x12xf32>, vector<12x8xf32>, vector<8x8xf32> -> vector<8x8xf32>
    %c0_6 = arith.constant 0 : index
    %c0_7 = arith.constant 0 : index
    %c0_8 = arith.constant 0 : index
    %13 = vector.load %arg3[%c0_6, %c0_7, %c0_8] : memref<1x8x8xf32, #tpu.memory_space<vmem>>, vector<1x8x8xf32>
    %14 = vector.shape_cast %13 : vector<1x8x8xf32> to vector<8x8xf32>
    %15 = vector.shape_cast %12 : vector<8x8xf32> to vector<1x8x8xf32>
    tpu.vector_store %arg3[%c0_6, %c0_7, %c0_8], %15 {strides = array<i32>} : memref<1x8x8xf32, #tpu.memory_space<vmem>>, vector<1x8x8xf32>,
    %cst_9 = arith.constant dense<0.000000e+00> : vector<8xf32>
    %16 = vector.multi_reduction <add>, %12, %cst_9 [0] : vector<8x8xf32> to vector<8xf32>
    %17 = vector.shape_cast %16 : vector<8xf32> to vector<1x8xf32>
    %18 = arith.mulf %12, %12 : vector<8x8xf32>
    %cst_10 = arith.constant dense<0.000000e+00> : vector<8xf32>
    %19 = vector.multi_reduction <add>, %18, %cst_10 [0] : vector<8x8xf32> to vector<8xf32>
    %20 = vector.shape_cast %19 : vector<8xf32> to vector<1x8xf32>
    %21 = tpu.concatenate %17, %20 in 0 : vector<1x8xf32>, vector<1x8xf32> -> vector<2x8xf32>
    %c0_11 = arith.constant 0 : index
    %c0_12 = arith.constant 0 : index
    %c0_13 = arith.constant 0 : index
    %22 = vector.load %arg4[%c0_11, %c0_12, %c0_13] : memref<1x2x8xf32, #tpu.memory_space<vmem>>, vector<1x2x8xf32>
    %23 = vector.shape_cast %22 : vector<1x2x8xf32> to vector<2x8xf32>
    %24 = vector.shape_cast %21 : vector<2x8xf32> to vector<1x2x8xf32>
    tpu.vector_store %arg4[%c0_11, %c0_12, %c0_13], %24 {strides = array<i32>} : memref<1x2x8xf32, #tpu.memory_space<vmem>>, vector<1x2x8xf32>,
    return
  }
  func.func @transform_0(%arg0: i32) -> (i32, i32, i32) {
    %c0_i32 = arith.constant 0 : i32
    %c0_i32_0 = arith.constant 0 : i32
    %c0_i32_1 = arith.constant 0 : i32
    return %arg0, %c0_i32, %c0_i32_0 : i32, i32, i32
  }
  func.func @transform_1(%arg0: i32) -> (i32, i32) {
    %c0_i32 = arith.constant 0 : i32
    %c0_i32_0 = arith.constant 0 : i32
    %c0_i32_1 = arith.constant 0 : i32
    return %c0_i32, %c0_i32_0 : i32, i32
  }
  func.func @transform_2(%arg0: i32) -> (i32, i32, i32) {
    %c0_i32 = arith.constant 0 : i32
    %c0_i32_0 = arith.constant 0 : i32
    %c0_i32_1 = arith.constant 0 : i32
    return %arg0, %c0_i32, %c0_i32_0 : i32, i32, i32
  }
  func.func @transform_3(%arg0: i32) -> (i32, i32, i32) {
    %c0_i32 = arith.constant 0 : i32
    %c0_i32_0 = arith.constant 0 : i32
    %c0_i32_1 = arith.constant 0 : i32
    return %arg0, %c0_i32, %c0_i32_0 : i32, i32, i32
  }
}

module attributes {stable_mosaic.version = 11 : i64} {
  func.func @_bn_relu_conv2_kernel(%arg0: i32, %arg1: memref<1x8x8xf32, #tpu.memory_space<vmem>>, %arg2: memref<1x8xf32, #tpu.memory_space<vmem>>, %arg3: memref<1x8xf32, #tpu.memory_space<vmem>>, %arg4: memref<24x8xf32, #tpu.memory_space<vmem>>, %arg5: memref<1x8x8xf32, #tpu.memory_space<vmem>>, %arg6: memref<1x2x8xf32, #tpu.memory_space<vmem>>) attributes {dimension_semantics = [#tpu.dimension_semantics<parallel>], iteration_bounds = array<i64: 2>, scalar_prefetch = 0 : i64, scratch_operands = 0 : i64, tpu.core_type = #tpu.core_type<tc>, window_params = [{transform_indices = @transform_0, window_bounds = array<i64: 1, 8, 8>}, {pipeline_mode = #tpu.pipeline_mode<synchronous>, transform_indices = @transform_1, window_bounds = array<i64: 1, 8>}, {pipeline_mode = #tpu.pipeline_mode<synchronous>, transform_indices = @transform_2, window_bounds = array<i64: 1, 8>}, {pipeline_mode = #tpu.pipeline_mode<synchronous>, transform_indices = @transform_3, window_bounds = array<i64: 24, 8>}, {transform_indices = @transform_4, window_bounds = array<i64: 1, 8, 8>}, {transform_indices = @transform_5, window_bounds = array<i64: 1, 2, 8>}]} {
    %c0 = arith.constant 0 : index
    %c0_0 = arith.constant 0 : index
    %c0_1 = arith.constant 0 : index
    %0 = vector.load %arg1[%c0, %c0_0, %c0_1] : memref<1x8x8xf32, #tpu.memory_space<vmem>>, vector<1x8x8xf32>
    %1 = vector.shape_cast %0 : vector<1x8x8xf32> to vector<8x8xf32>
    %c0_2 = arith.constant 0 : index
    %c0_3 = arith.constant 0 : index
    %2 = vector.load %arg2[%c0_2, %c0_3] : memref<1x8xf32, #tpu.memory_space<vmem>>, vector<1x8xf32>
    %3 = vector.broadcast %2 : vector<1x8xf32> to vector<8x8xf32>
    %4 = arith.mulf %1, %3 : vector<8x8xf32>
    %c0_4 = arith.constant 0 : index
    %c0_5 = arith.constant 0 : index
    %5 = vector.load %arg3[%c0_4, %c0_5] : memref<1x8xf32, #tpu.memory_space<vmem>>, vector<1x8xf32>
    %6 = vector.broadcast %5 : vector<1x8xf32> to vector<8x8xf32>
    %7 = arith.addf %4, %6 : vector<8x8xf32>
    %cst = arith.constant 0.000000e+00 : f32
    %8 = vector.broadcast %cst : f32 to vector<8x8xf32>
    %9 = arith.maximumf %7, %8 : vector<8x8xf32>
    %c0_6 = arith.constant 0 : index
    %c0_7 = arith.constant 0 : index
    %10 = vector.load %arg4[%c0_6, %c0_7] : memref<24x8xf32, #tpu.memory_space<vmem>>, vector<24x8xf32>
    %cst_8 = arith.constant 0.000000e+00 : f32
    %11 = vector.broadcast %cst_8 : f32 to vector<1x8xf32>
    %12 = vector.extract_strided_slice %9 {offsets = [0, 0], sizes = [7, 8], strides = [1, 1]} : vector<8x8xf32> to vector<7x8xf32>
    %13 = tpu.concatenate %11, %12 in 0 : vector<1x8xf32>, vector<7x8xf32> -> vector<8x8xf32>
    %14 = vector.extract_strided_slice %9 {offsets = [1, 0], sizes = [7, 8], strides = [1, 1]} : vector<8x8xf32> to vector<7x8xf32>
    %15 = tpu.concatenate %14, %11 in 0 : vector<7x8xf32>, vector<1x8xf32> -> vector<8x8xf32>
    %16 = tpu.concatenate %13, %9, %15 in 1 : vector<8x8xf32>, vector<8x8xf32>, vector<8x8xf32> -> vector<8x24xf32>
    %cst_9 = arith.constant dense<0.000000e+00> : vector<8x8xf32>
    %17 = tpu.matmul %16, %10, %cst_9 {dimension_numbers = #tpu.dot_dimension_numbers<[1], [0], [0], [1], [0, 0, 1, 1], [], []>} : vector<8x24xf32>, vector<24x8xf32>, vector<8x8xf32> -> vector<8x8xf32>
    %c0_10 = arith.constant 0 : index
    %c0_11 = arith.constant 0 : index
    %c0_12 = arith.constant 0 : index
    %18 = vector.load %arg5[%c0_10, %c0_11, %c0_12] : memref<1x8x8xf32, #tpu.memory_space<vmem>>, vector<1x8x8xf32>
    %19 = vector.shape_cast %18 : vector<1x8x8xf32> to vector<8x8xf32>
    %20 = vector.shape_cast %17 : vector<8x8xf32> to vector<1x8x8xf32>
    tpu.vector_store %arg5[%c0_10, %c0_11, %c0_12], %20 {strides = array<i32>} : memref<1x8x8xf32, #tpu.memory_space<vmem>>, vector<1x8x8xf32>,
    %cst_13 = arith.constant dense<0.000000e+00> : vector<8xf32>
    %21 = vector.multi_reduction <add>, %17, %cst_13 [0] : vector<8x8xf32> to vector<8xf32>
    %22 = vector.shape_cast %21 : vector<8xf32> to vector<1x8xf32>
    %23 = arith.mulf %17, %17 : vector<8x8xf32>
    %cst_14 = arith.constant dense<0.000000e+00> : vector<8xf32>
    %24 = vector.multi_reduction <add>, %23, %cst_14 [0] : vector<8x8xf32> to vector<8xf32>
    %25 = vector.shape_cast %24 : vector<8xf32> to vector<1x8xf32>
    %26 = tpu.concatenate %22, %25 in 0 : vector<1x8xf32>, vector<1x8xf32> -> vector<2x8xf32>
    %c0_15 = arith.constant 0 : index
    %c0_16 = arith.constant 0 : index
    %c0_17 = arith.constant 0 : index
    %27 = vector.load %arg6[%c0_15, %c0_16, %c0_17] : memref<1x2x8xf32, #tpu.memory_space<vmem>>, vector<1x2x8xf32>
    %28 = vector.shape_cast %27 : vector<1x2x8xf32> to vector<2x8xf32>
    %29 = vector.shape_cast %26 : vector<2x8xf32> to vector<1x2x8xf32>
    tpu.vector_store %arg6[%c0_15, %c0_16, %c0_17], %29 {strides = array<i32>} : memref<1x2x8xf32, #tpu.memory_space<vmem>>, vector<1x2x8xf32>,
    return
  }
  func.func @transform_0(%arg0: i32) -> (i32, i32, i32) {
    %c0_i32 = arith.constant 0 : i32
    %c0_i32_0 = arith.constant 0 : i32
    %c0_i32_1 = arith.constant 0 : i32
    return %arg0, %c0_i32, %c0_i32_0 : i32, i32, i32
  }
  func.func @transform_1(%arg0: i32) -> (i32, i32) {
    %c0_i32 = arith.constant 0 : i32
    %c0_i32_0 = arith.constant 0 : i32
    %c0_i32_1 = arith.constant 0 : i32
    return %c0_i32, %c0_i32_0 : i32, i32
  }
  func.func @transform_2(%arg0: i32) -> (i32, i32) {
    %c0_i32 = arith.constant 0 : i32
    %c0_i32_0 = arith.constant 0 : i32
    %c0_i32_1 = arith.constant 0 : i32
    return %c0_i32, %c0_i32_0 : i32, i32
  }
  func.func @transform_3(%arg0: i32) -> (i32, i32) {
    %c0_i32 = arith.constant 0 : i32
    %c0_i32_0 = arith.constant 0 : i32
    %c0_i32_1 = arith.constant 0 : i32
    return %c0_i32, %c0_i32_0 : i32, i32
  }
  func.func @transform_4(%arg0: i32) -> (i32, i32, i32) {
    %c0_i32 = arith.constant 0 : i32
    %c0_i32_0 = arith.constant 0 : i32
    %c0_i32_1 = arith.constant 0 : i32
    return %arg0, %c0_i32, %c0_i32_0 : i32, i32, i32
  }
  func.func @transform_5(%arg0: i32) -> (i32, i32, i32) {
    %c0_i32 = arith.constant 0 : i32
    %c0_i32_0 = arith.constant 0 : i32
    %c0_i32_1 = arith.constant 0 : i32
    return %arg0, %c0_i32, %c0_i32_0 : i32, i32, i32
  }
}

module attributes {stable_mosaic.version = 11 : i64} {
  func.func @_bn_relu_out_kernel(%arg0: i32, %arg1: memref<1x8x8xf32, #tpu.memory_space<vmem>>, %arg2: memref<1x8xf32, #tpu.memory_space<vmem>>, %arg3: memref<1x8xf32, #tpu.memory_space<vmem>>, %arg4: memref<1x8x8xf32, #tpu.memory_space<vmem>>) attributes {dimension_semantics = [#tpu.dimension_semantics<parallel>], iteration_bounds = array<i64: 2>, scalar_prefetch = 0 : i64, scratch_operands = 0 : i64, tpu.core_type = #tpu.core_type<tc>, window_params = [{transform_indices = @transform_0, window_bounds = array<i64: 1, 8, 8>}, {pipeline_mode = #tpu.pipeline_mode<synchronous>, transform_indices = @transform_1, window_bounds = array<i64: 1, 8>}, {pipeline_mode = #tpu.pipeline_mode<synchronous>, transform_indices = @transform_2, window_bounds = array<i64: 1, 8>}, {transform_indices = @transform_3, window_bounds = array<i64: 1, 8, 8>}]} {
    %c0 = arith.constant 0 : index
    %c0_0 = arith.constant 0 : index
    %c0_1 = arith.constant 0 : index
    %0 = vector.load %arg1[%c0, %c0_0, %c0_1] : memref<1x8x8xf32, #tpu.memory_space<vmem>>, vector<1x8x8xf32>
    %1 = vector.shape_cast %0 : vector<1x8x8xf32> to vector<8x8xf32>
    %c0_2 = arith.constant 0 : index
    %c0_3 = arith.constant 0 : index
    %2 = vector.load %arg2[%c0_2, %c0_3] : memref<1x8xf32, #tpu.memory_space<vmem>>, vector<1x8xf32>
    %3 = vector.broadcast %2 : vector<1x8xf32> to vector<8x8xf32>
    %4 = arith.mulf %1, %3 : vector<8x8xf32>
    %c0_4 = arith.constant 0 : index
    %c0_5 = arith.constant 0 : index
    %5 = vector.load %arg3[%c0_4, %c0_5] : memref<1x8xf32, #tpu.memory_space<vmem>>, vector<1x8xf32>
    %6 = vector.broadcast %5 : vector<1x8xf32> to vector<8x8xf32>
    %7 = arith.addf %4, %6 : vector<8x8xf32>
    %cst = arith.constant 0.000000e+00 : f32
    %8 = vector.broadcast %cst : f32 to vector<8x8xf32>
    %9 = arith.maximumf %7, %8 : vector<8x8xf32>
    %10 = tpu.transpose %9, [1, 0] : vector<8x8xf32> -> vector<8x8xf32>
    %c0_6 = arith.constant 0 : index
    %c0_7 = arith.constant 0 : index
    %c0_8 = arith.constant 0 : index
    %11 = vector.load %arg4[%c0_6, %c0_7, %c0_8] : memref<1x8x8xf32, #tpu.memory_space<vmem>>, vector<1x8x8xf32>
    %12 = vector.shape_cast %11 : vector<1x8x8xf32> to vector<8x8xf32>
    %13 = vector.shape_cast %10 : vector<8x8xf32> to vector<1x8x8xf32>
    tpu.vector_store %arg4[%c0_6, %c0_7, %c0_8], %13 {strides = array<i32>} : memref<1x8x8xf32, #tpu.memory_space<vmem>>, vector<1x8x8xf32>,
    return
  }
  func.func @transform_0(%arg0: i32) -> (i32, i32, i32) {
    %c0_i32 = arith.constant 0 : i32
    %c0_i32_0 = arith.constant 0 : i32
    %c0_i32_1 = arith.constant 0 : i32
    return %arg0, %c0_i32, %c0_i32_0 : i32, i32, i32
  }
  func.func @transform_1(%arg0: i32) -> (i32, i32) {
    %c0_i32 = arith.constant 0 : i32
    %c0_i32_0 = arith.constant 0 : i32
    %c0_i32_1 = arith.constant 0 : i32
    return %c0_i32, %c0_i32_0 : i32, i32
  }
  func.func @transform_2(%arg0: i32) -> (i32, i32) {
    %c0_i32 = arith.constant 0 : i32
    %c0_i32_0 = arith.constant 0 : i32
    %c0_i32_1 = arith.constant 0 : i32
    return %c0_i32, %c0_i32_0 : i32, i32
  }
  func.func @transform_3(%arg0: i32) -> (i32, i32, i32) {
    %c0_i32 = arith.constant 0 : i32
    %c0_i32_0 = arith.constant 0 : i32
    %c0_i32_1 = arith.constant 0 : i32
    return %arg0, %c0_i32, %c0_i32_0 : i32, i32, i32
  }
}

</mosaic_0001>

<llo_original>
// kernel: downsample_forward.4
$region0: #{downsample_forward.4}
  #allocation0 [shape = 'u32[]', space=smem, size = 0x4, offset = 0x4, fixed_abs, tag = 'smem constant byte address 0x4 - core index']
  #allocation1 [shape = 'u32[144,128]{1,0:T(1,128)}', space=vmem, size = 0x12000, scoped, tag = 'internal scratch']
  %s0 = inlined_call_operand.vmem [shape: f32[2,8,8], index: 0, kind: input, shape index: {}]
  %s1 = inlined_call_operand.vmem [shape: f32[1,8], index: 1, kind: input, shape index: {}]
  %s2 = inlined_call_operand.vmem [shape: f32[1,8], index: 2, kind: input, shape index: {}]
  %s3 = inlined_call_operand.vmem [shape: f32[24,8], index: 3, kind: input, shape index: {}]
  %s4 = inlined_call_operand.vmem [shape: f32[2,8,8], index: 4, kind: output, shape index: {0}]
  %s5 = inlined_call_operand.vmem [shape: f32[2,2,8], index: 5, kind: output, shape index: {1}]
  %6 = xla_tuple %s4, %s5
  %s7 = sld [smem:[#allocation0]]
  $region57: #{downsample_forward.4} parent=0
    _
  %s9 = ssub.s32 1, %s7
  %s10 = scalar_select 0, %s9, %s7
  loop: start=0, step=1, limit=4
  $region2: #{downsample_forward.4} parent=0 // loop_pre_header
    _
  $region3: #{downsample_forward.4} parent=0 // loop_header
    %s12 = sphi 0, %s16
    %p13 = scmp.ge.s32.totalorder %s12, 4
    %s22 = sphi 0, %s24
    %s25 = sphi 0, %s22
    %s26 = sphi 0, %s25
    %s42 = sphi 0, %s26
    %s46 = sphi 0, %s46
    %s48 = sphi 0, %s46
    %s49 = sphi 0, %s48
    %s63 = sphi 0, %s49
    %s67 = sphi 0, %s67
    %s69 = sphi 0, %s67
    %s70 = sphi 0, %s69
    %s84 = sphi 0, %s70
    %s88 = sphi 0, %s88
    %s90 = sphi 0, %s88
    %s91 = sphi 0, %s90
    %s105 = sphi 0, %s91
    %s111 = sphi 0, %s113
    %s114 = sphi 0, %s111
    %s115 = sphi 0, %s114
    %s131 = sphi 0, %s115
    %s137 = sphi 0, %s139
    %s140 = sphi 0, %s137
    %s141 = sphi 0, %s140
    %s157 = sphi 0, %s141
  $region4: #{downsample_forward.4} parent=0 // loop_header_branch
    %15 = sbr.rel (%p13) target = $region8
  $region5: #{downsample_forward.4} parent=0 // loop_body
    %s17 = ssub.s32 %s12, 1
    %s18 = ssub.s32 %s12, 2
    %s19 = sadd.s32 %s12, 1
    %s20 = ssub.s32 %s12, %s19
    %p21 = scmp.eq.s32.totalorder %s20, 0
    %s23 = sadd.s32 %s22, 1
    %s24 = scalar_select %p21, %s22, %s23
    %p27 = pneg %p21
    %p28 = scmp.eq.s32.totalorder %s12, 1
    %p29 = por %p27, %p28
    %p30 = scmp.ne.s32.totalorder %s22, %s25
    %p31 = scmp.eq.s32.totalorder %s12, 0
    %p32 = por %p30, %p31
    %p33 = scmp.ne.s32.totalorder %s22, %s25
    %p34 = scmp.eq.s32.totalorder %s17, 1
    %p35 = por %p33, %p34
    %p36 = scmp.ne.s32.totalorder %s25, %s26
    %p37 = scmp.eq.s32.totalorder %s17, 0
    %p38 = por %p36, %p37
    %p39 = scmp.ne.s32.totalorder %s25, %s26
    %p40 = scmp.eq.s32.totalorder %s18, 1
    %p41 = por %p39, %p40
    %p43 = scmp.ne.s32.totalorder %s26, %s42
    %p44 = scmp.eq.s32.totalorder %s18, 0
    %p45 = por %p43, %p44
    %s47 = sadd.s32 %s46, 1
    %p50 = scmp.eq.s32.totalorder %s12, 1
    %p51 = scmp.ne.s32.totalorder %s46, %s48
    %p52 = scmp.eq.s32.totalorder %s12, 0
    %p53 = por %p51, %p52
    %p54 = scmp.ne.s32.totalorder %s46, %s48
    %p55 = scmp.eq.s32.totalorder %s17, 1
    %p56 = por %p54, %p55
    %p57 = scmp.ne.s32.totalorder %s48, %s49
    %p58 = scmp.eq.s32.totalorder %s17, 0
    %p59 = por %p57, %p58
    %p60 = scmp.ne.s32.totalorder %s48, %s49
    %p61 = scmp.eq.s32.totalorder %s18, 1
    %p62 = por %p60, %p61
    %p64 = scmp.ne.s32.totalorder %s49, %s63
    %p65 = scmp.eq.s32.totalorder %s18, 0
    %p66 = por %p64, %p65
    %s68 = sadd.s32 %s67, 1
    %p71 = scmp.eq.s32.totalorder %s12, 1
    %p72 = scmp.ne.s32.totalorder %s67, %s69
    %p73 = scmp.eq.s32.totalorder %s12, 0
    %p74 = por %p72, %p73
    %p75 = scmp.ne.s32.totalorder %s67, %s69
    %p76 = scmp.eq.s32.totalorder %s17, 1
    %p77 = por %p75, %p76
    %p78 = scmp.ne.s32.totalorder %s69, %s70
    %p79 = scmp.eq.s32.totalorder %s17, 0
    %p80 = por %p78, %p79
    %p81 = scmp.ne.s32.totalorder %s69, %s70
    %p82 = scmp.eq.s32.totalorder %s18, 1
    %p83 = por %p81, %p82
    %p85 = scmp.ne.s32.totalorder %s70, %s84
    %p86 = scmp.eq.s32.totalorder %s18, 0
    %p87 = por %p85, %p86
    %s89 = sadd.s32 %s88, 1
    %p92 = scmp.eq.s32.totalorder %s12, 1
    %p93 = scmp.ne.s32.totalorder %s88, %s90
    %p94 = scmp.eq.s32.totalorder %s12, 0
    %p95 = por %p93, %p94
    %p96 = scmp.ne.s32.totalorder %s88, %s90
    %p97 = scmp.eq.s32.totalorder %s17, 1
    %p98 = por %p96, %p97
    %p99 = scmp.ne.s32.totalorder %s90, %s91
    %p100 = scmp.eq.s32.totalorder %s17, 0
    %p101 = por %p99, %p100
    %p102 = scmp.ne.s32.totalorder %s90, %s91
    %p103 = scmp.eq.s32.totalorder %s18, 1
    %p104 = por %p102, %p103
    %p106 = scmp.ne.s32.totalorder %s91, %s105
    %p107 = scmp.eq.s32.totalorder %s18, 0
    %p108 = por %p106, %p107
    %s109 = ssub.s32 %s12, %s19
    %p110 = scmp.eq.s32.totalorder %s109, 0
    %s112 = sadd.s32 %s111, 1
    %s113 = scalar_select %p110, %s111, %s112
    %p116 = pneg %p110
    %p117 = scmp.eq.s32.totalorder %s12, 1
    %p118 = por %p116, %p117
    %p119 = scmp.ne.s32.totalorder %s111, %s114
    %p120 = scmp.eq.s32.totalorder %s12, 0
    %p121 = por %p119, %p120
    %p122 = scmp.ne.s32.totalorder %s111, %s114
    %p123 = scmp.eq.s32.totalorder %s17, 1
    %p124 = por %p122, %p123
    %p125 = scmp.ne.s32.totalorder %s114, %s115
    %p126 = scmp.eq.s32.totalorder %s17, 0
    %p127 = por %p125, %p126
    %p128 = scmp.ne.s32.totalorder %s114, %s115
    %p129 = scmp.eq.s32.totalorder %s18, 1
    %p130 = por %p128, %p129
    %p132 = scmp.ne.s32.totalorder %s115, %s131
    %p133 = scmp.eq.s32.totalorder %s18, 0
    %p134 = por %p132, %p133
    %s135 = ssub.s32 %s12, %s19
    %p136 = scmp.eq.s32.totalorder %s135, 0
    %s138 = sadd.s32 %s137, 1
    %s139 = scalar_select %p136, %s137, %s138
    %p142 = pneg %p136
    %p143 = scmp.eq.s32.totalorder %s12, 1
    %p144 = por %p142, %p143
    %p145 = scmp.ne.s32.totalorder %s137, %s140
    %p146 = scmp.eq.s32.totalorder %s12, 0
    %p147 = por %p145, %p146
    %p148 = scmp.ne.s32.totalorder %s137, %s140
    %p149 = scmp.eq.s32.totalorder %s17, 1
    %p150 = por %p148, %p149
    %p151 = scmp.ne.s32.totalorder %s140, %s141
    %p152 = scmp.eq.s32.totalorder %s17, 0
    %p153 = por %p151, %p152
    %p154 = scmp.ne.s32.totalorder %s140, %s141
    %p155 = scmp.eq.s32.totalorder %s18, 1
    %p156 = por %p154, %p155
    %p158 = scmp.ne.s32.totalorder %s141, %s157
    %p159 = scmp.eq.s32.totalorder %s18, 0
    %p160 = por %p158, %p159
    %p161 = scmp.le.s32.totalorder 1, %s12
    %p162 = scmp.lt.s32.totalorder %s12, 3
    %p163 = pnand %p161, %p162
    %p164 = pneg %p163
    // Predicated region
    $region9: #{downsample_forward.4} parent=5 // pred_check
      _
    $region10: #{downsample_forward.4} parent=5 // pred_check_branch
      %166 = sbr.rel (%p163) target = $region12
    $region11: #{downsample_forward.4} parent=5 // pred_region
      %s167 = ssub.s32 %s12, 1
      // Predicated region
      $region13: #{downsample_forward.4} parent=11 // pred_check
        %p168 = pneg %p59
      $region14: #{downsample_forward.4} parent=11 // pred_check_branch
        %170 = sbr.rel (%p168) target = $region16
      $region15: #{downsample_forward.4} parent=11 // pred_region
        _
      $region16: #{downsample_forward.4} parent=11 // pred_fallthru
        _
      // Predicated region
      $region17: #{downsample_forward.4} parent=11 // pred_check
        %p171 = pneg %p80
      $region18: #{downsample_forward.4} parent=11 // pred_check_branch
        %173 = sbr.rel (%p171) target = $region20
      $region19: #{downsample_forward.4} parent=11 // pred_region
        _
      $region20: #{downsample_forward.4} parent=11 // pred_fallthru
        _
      // Predicated region
      $region21: #{downsample_forward.4} parent=11 // pred_check
        %p174 = pneg %p101
      $region22: #{downsample_forward.4} parent=11 // pred_check_branch
        %176 = sbr.rel (%p174) target = $region24
      $region23: #{downsample_forward.4} parent=11 // pred_region
        _
      $region24: #{downsample_forward.4} parent=11 // pred_fallthru
        _
    $region12: #{downsample_forward.4} parent=5 // pred_fallthru
      _
    %p177 = scmp.lt.s32.totalorder %s12, 2
    // Predicated region
    $region25: #{downsample_forward.4} parent=5 // pred_check
      %p178 = pneg %p177
    $region26: #{downsample_forward.4} parent=5 // pred_check_branch
      %180 = sbr.rel (%p178) target = $region28
    $region27: #{downsample_forward.4} parent=5 // pred_region
      // Predicated region
      $region29: #{downsample_forward.4} parent=27 // pred_check
        %p181 = pneg %p32
      $region30: #{downsample_forward.4} parent=27 // pred_check_branch
        %183 = sbr.rel (%p181) target = $region32
      $region31: #{downsample_forward.4} parent=27 // pred_region
        %p184 = scmp.lt.s32.totalorder %s12, 1
        %s185 = scalar_select %p184, %s12, 1
        %s186 = smul.addr %s185, 8
        %s187 = scalar_lea.vmem %s0, %s186
      $region32: #{downsample_forward.4} parent=27 // pred_fallthru
        _
    $region28: #{downsample_forward.4} parent=5 // pred_fallthru
      _
    %p188 = scmp.le.s32.totalorder 1, %s12
    %p189 = scmp.lt.s32.totalorder %s12, 3
    %p190 = pnand %p188, %p189
    %p191 = pneg %p190
    // Predicated region
    $region33: #{downsample_forward.4} parent=5 // pred_check
      _
    $region34: #{downsample_forward.4} parent=5 // pred_check_branch
      %193 = sbr.rel (%p190) target = $region36
    $region35: #{downsample_forward.4} parent=5 // pred_region
      %s194 = ssub.s32 %s12, 1
      %p195 = scmp.lt.s32.totalorder %s17, 1
      %s196 = scalar_select %p195, %s17, 1
      %s197 = smul.addr %s196, 8
      %s198 = scalar_lea.vmem %s0, %s197
      %p199 = pneg %p38
      %p200 = pneg %p35
      %p201 = pneg %p59
      %p202 = pneg %p56
      %p203 = pneg %p80
      %p204 = pneg %p77
      %p205 = pneg %p101
      %p206 = pneg %p98
      %p207 = pneg %p127
      %p208 = pneg %p124
      %p209 = scmp.lt.s32.totalorder %s17, 1
      %s210 = scalar_select %p209, %s17, 1
      %s211 = smul.addr %s210, 8
      %s212 = scalar_lea.vmem %s4, %s211
      %p213 = pneg %p153
      %p214 = pneg %p150
      %p215 = scmp.lt.s32.totalorder %s17, 1
      %s216 = scalar_select %p215, %s17, 1
      %s217 = smul.addr %s216, 2
      %s218 = scalar_lea.vmem %s5, %s217
      %p219 = scmp.lt.s32.totalorder %s17, 1
      %s220 = scalar_select %p219, %s17, 1
      %s221 = smul.addr %s220, 8
      %s222 = scalar_lea.vmem %s0, %s221
      %p223 = scmp.lt.s32.totalorder %s17, 1
      %s224 = scalar_select %p223, %s17, 1
      %s225 = smul.addr %s224, 8
      %s226 = scalar_lea.vmem %s4, %s225
      %p227 = scmp.lt.s32.totalorder %s17, 1
      %s228 = scalar_select %p227, %s17, 1
      %s229 = smul.addr %s228, 2
      %s230 = scalar_lea.vmem %s5, %s229
      %v231 = vld [vmem:[%s222] sm:$0xff]
      %v232 = vld [vmem:[%s1] sm:$0x1]
      %v234 = vlaneseq
      %v235 = vshrl.u32 %v234, 7
      %v236 = vsub.s32 0, %v235
      %v237 = vrot.slane %v232, %v236
      %v239 = vmul.f32 %v231, %v237
      %v240 = vld [vmem:[%s2] sm:$0x1]
      %v242 = vlaneseq
      %v243 = vshrl.u32 %v242, 7
      %v244 = vsub.s32 0, %v243
      %v245 = vrot.slane %v240, %v244
      %v247 = vadd.f32 %v239, %v245
      %v248 = vmax.f32 %v247, 0.0
      %v249 = vld [vmem:[%s3] sm:$0xff]
      %v250 = vld [vmem:[%s3 + $0x8] sm:$0xff]
      %v251 = vld [vmem:[%s3 + $0x10] sm:$0xff]
      %v253 = vrot.slane %v248, 7
      %vm255 = vcmask 1040384
      %v256 = vsel %vm255, 0.0, %v253
      %v257 = vrot.slane %v248, 1
      %vm259 = vcmask 1046528
      %v260 = vsel %vm259, %v257, 0.0
      %261 = vrot.lane.b32.xlu0 %v248, 8
      %v262 = vpop.permute.xlu0 %261
      %265 = vrot.lane.b32.xlu0 %v260, 16
      %v266 = vpop.permute.xlu0 %265
      %vm268 = vcmask 64512
      %v269 = vsel %vm268, %v256, %v262
      %vm270 = vcmask 130048
      %v271 = vsel %vm270, %v269, %v266
      %vm272 = vcmask 195584
      %v274 = vsel %vm272, %v271, 0
      %276 = vmatprep.subr.mxu0 0.0
      %277 = vmatpush1.msra.mxu0 %v249
      %278 = vmatprep.subr.mxu0 0.0
      %279 = vmatpush1.msra.mxu0 %v250
      %280 = vmatprep.subr.mxu0 0.0
      %281 = vmatpush1.msra.mxu0 %v251
      %282 = vmatprep.subr.mxu0 0.0
      %283 = vmatpush1.msra.mxu0 0.0
      %284 = vmatprep.subr.mxu0 0.0
      %285 = vmatpush1.msra.mxu0 0.0
      %286 = vmatprep.subr.mxu0 0.0
      %287 = vmatpush1.msra.mxu0 0.0
      %288 = vmatprep.subr.mxu0 0.0
      %289 = vmatpush1.msra.mxu0 0.0
      %290 = vmatprep.subr.mxu0 0.0
      %291 = vmatpush1.msra.mxu0 0.0
      %292 = vmatprep.subr.mxu0 0.0
      %293 = vmatpush1.msra.mxu0 0.0
      %294 = vmatprep.subr.mxu0 0.0
      %295 = vmatpush1.msra.mxu0 0.0
      %296 = vmatprep.subr.mxu0 0.0
      %297 = vmatpush1.msra.mxu0 0.0
      %298 = vmatprep.subr.mxu0 0.0
      %299 = vmatpush1.msra.mxu0 0.0
      %300 = vmatprep.subr.mxu0 0.0
      %301 = vmatpush1.msra.mxu0 0.0
      %302 = vmatprep.subr.mxu0 0.0
      %303 = vmatpush1.msra.mxu0 0.0
      %304 = vmatprep.subr.mxu0 0.0
      %305 = vmatpush1.msra.mxu0 0.0
      %306 = vmatprep.subr.mxu0 0.0
      %307 = vmatpush1.msra.mxu0 0.0
      %308 = vmatprep.subr.mxu0 0.0
      %309 = vmatpush1.msra.mxu0 0.0
      %310 = vmatprep.subr.mxu0 0.0
      %311 = vmatpush1.msra.mxu0 0.0
      %312 = vmatprep.subr.mxu0 0.0
      %313 = vmatpush1.msra.mxu0 0.0
      %314 = vmatprep.subr.mxu0 0.0
      %315 = vmatpush1.msra.mxu0 0.0
      %316 = vmatprep.subr.mxu0 0.0
      %317 = vmatpush1.msra.mxu0 0.0
      %318 = vmatprep.subr.mxu0 0.0
      %319 = vmatpush1.msra.mxu0 0.0
      %320 = vmatprep.subr.mxu0 0.0
      %321 = vmatpush1.msra.mxu0 0.0
      %322 = vmatprep.subr.mxu0 0.0
      %323 = vmatpush1.msra.mxu0 0.0
      %324 = vmatprep.subr.mxu0 0.0
      %325 = vmatpush1.msra.mxu0 0.0
      %326 = vmatprep.subr.mxu0 0.0
      %327 = vmatpush1.msra.mxu0 0.0
      %328 = vmatprep.subr.mxu0 0.0
      %329 = vmatpush1.msra.mxu0 0.0
      %330 = vmatprep.subr.mxu0 0.0
      %331 = vmatpush1.msra.mxu0 0.0
      %332 = vmatprep.subr.mxu0 0.0
      %333 = vmatpush1.msra.mxu0 0.0
      %334 = vmatprep.subr.mxu0 0.0
      %335 = vmatpush1.msra.mxu0 0.0
      %336 = vmatprep.subr.mxu0 0.0
      %337 = vmatpush1.msra.mxu0 0.0
      %338 = vmatprep.subr.mxu0 0.0
      %339 = vmatpush1.msra.mxu0 0.0
      %340 = vmatprep.mubr.f32.mxu0 0.0
      %341 = vmatmul.mubr.f32.gmra.mrb[0].mxu0 %v274
      %v342 = vpop.f32.mrb[0].mxu0
      %v343 = vadd.f32 0.0, %v342
      %v344 = vpop.f32.mrb[0].mxu0
      %345 = vdwg.mxu0
      %346 = vst.msk [vmem:[%s226] sm:$0xff] %vm268, %v343
      %v347 = vsel %vm268, %v343, 0.0
      %v348 = vrot.slane %v347, 4
      %v349 = vadd.f32 %v347, %v348
      %v350 = vrot.slane %v349, 2
      %v351 = vadd.f32 %v349, %v350
      %v352 = vrot.slane %v351, 1
      %v353 = vadd.f32 %v351, %v352
      %v354 = vmul.f32 %v343, %v343
      %v355 = vsel %vm268, %v354, 0.0
      %v356 = vrot.slane %v355, 4
      %v357 = vadd.f32 %v355, %v356
      %v358 = vrot.slane %v357, 2
      %v359 = vadd.f32 %v357, %v358
      %v360 = vrot.slane %v359, 1
      %v361 = vadd.f32 %v359, %v360
      %v362 = vsel %vm255, %v353, %v361
      %vm363 = vcmask 58368
      %364 = vst.msk [vmem:[%s230] sm:$0x3] %vm363, %v362
      %p365 = scmp.lt.s32.totalorder %s17, 1
      %s366 = scalar_select %p365, %s17, 1
      %s367 = smul.addr %s366, 8
      %s368 = scalar_lea.vmem %s4, %s367
      %p369 = scmp.lt.s32.totalorder %s17, 1
      %s370 = scalar_select %p369, %s17, 1
      %s371 = smul.addr %s370, 2
      %s372 = scalar_lea.vmem %s5, %s371
      // Predicated region
      $region37: #{downsample_forward.4} parent=35 // pred_check
        %p373 = pneg %p124
      $region38: #{downsample_forward.4} parent=35 // pred_check_branch
        %375 = sbr.rel (%p373) target = $region40
      $region39: #{downsample_forward.4} parent=35 // pred_region
        _
      $region40: #{downsample_forward.4} parent=35 // pred_fallthru
        _
      // Predicated region
      $region41: #{downsample_forward.4} parent=35 // pred_check
        %p376 = pneg %p150
      $region42: #{downsample_forward.4} parent=35 // pred_check_branch
        %378 = sbr.rel (%p376) target = $region44
      $region43: #{downsample_forward.4} parent=35 // pred_region
        _
      $region44: #{downsample_forward.4} parent=35 // pred_fallthru
        _
    $region36: #{downsample_forward.4} parent=5 // pred_fallthru
      _
    %p379 = scmp.le.s32.totalorder 2, %s12
    // Predicated region
    $region45: #{downsample_forward.4} parent=5 // pred_check
      %p380 = pneg %p379
    $region46: #{downsample_forward.4} parent=5 // pred_check_branch
      %382 = sbr.rel (%p380) target = $region48
    $region47: #{downsample_forward.4} parent=5 // pred_region
      %s383 = ssub.s32 %s12, 2
      // Predicated region
      $region49: #{downsample_forward.4} parent=47 // pred_check
        %p384 = pneg %p130
      $region50: #{downsample_forward.4} parent=47 // pred_check_branch
        %386 = sbr.rel (%p384) target = $region52
      $region51: #{downsample_forward.4} parent=47 // pred_region
        %p387 = scmp.lt.s32.totalorder %s18, 1
        %s388 = scalar_select %p387, %s18, 1
        %s389 = smul.addr %s388, 8
        %s390 = scalar_lea.vmem %s4, %s389
      $region52: #{downsample_forward.4} parent=47 // pred_fallthru
        _
      // Predicated region
      $region53: #{downsample_forward.4} parent=47 // pred_check
        %p391 = pneg %p156
      $region54: #{downsample_forward.4} parent=47 // pred_check_branch
        %393 = sbr.rel (%p391) target = $region56
      $region55: #{downsample_forward.4} parent=47 // pred_region
        %p394 = scmp.lt.s32.totalorder %s18, 1
        %s395 = scalar_select %p394, %s18, 1
        %s396 = smul.addr %s395, 2
        %s397 = scalar_lea.vmem %s5, %s396
      $region56: #{downsample_forward.4} parent=47 // pred_fallthru
        _
    $region48: #{downsample_forward.4} parent=5 // pred_fallthru
      _
  $region6: #{downsample_forward.4} parent=0 // loop_footer
    %s16 = sadd.s32 1, %s12
  $region7: #{downsample_forward.4} parent=0 // loop_footer_branch
    %11 = sbr.rel target = $region3
  $region8: #{downsample_forward.4} parent=0 // loop_exit
    _

// kernel: downsample_forward.5
$region0: #{downsample_forward.5}
  #allocation0 [shape = 'u32[]', space=smem, size = 0x4, offset = 0x4, fixed_abs, tag = 'smem constant byte address 0x4 - core index']
  #allocation1 [shape = 'u32[144,128]{1,0:T(1,128)}', space=vmem, size = 0x12000, scoped, tag = 'internal scratch']
  %s0 = inlined_call_operand.vmem [shape: f32[2,8,8], index: 0, kind: input, shape index: {}]
  %s1 = inlined_call_operand.vmem [shape: f32[1,8], index: 1, kind: input, shape index: {}]
  %s2 = inlined_call_operand.vmem [shape: f32[1,8], index: 2, kind: input, shape index: {}]
  %s3 = inlined_call_operand.hbm [shape: f32[2,8,8], index: 3, kind: output, shape index: {}]
  %s4 = sld [smem:[#allocation0]]
  $region45: #{downsample_forward.5} parent=0
    _
  %s6 = ssub.s32 1, %s4
  %s7 = scalar_select 0, %s6, %s4
  $region1: #{downsample_forward.5} parent=0
    #allocation2 [shape = 'u8[8192]{0}', space=vmem, size = 0x2000, scoped, tag = 'output window, operand 0']
    #allocation3 [shape = 's32[2]{0}', space=sflag, size = 0x8, scoped, tag = 'scoped memory for downsample_forward.5']
    %8 = vsyncpa [#allocation3], 0
    %s9 = scalar_lea.sflag [#allocation3], 1
    %10 = vsyncpa %s9, 0
    loop: start=0, step=1, limit=4
    $region2: #{downsample_forward.5} parent=1 // loop_pre_header
      _
    $region3: #{downsample_forward.5} parent=1 // loop_header
      %s12 = sphi 0, %s16
      %p13 = scmp.ge.s32.totalorder %s12, 4
      %s22 = sphi 0, %s24
      %s25 = sphi 0, %s22
      %s26 = sphi 0, %s25
      %s42 = sphi 0, %s26
      %s46 = sphi 0, %s46
      %s48 = sphi 0, %s46
      %s49 = sphi 0, %s48
      %s63 = sphi 0, %s49
      %s67 = sphi 0, %s67
      %s69 = sphi 0, %s67
      %s70 = sphi 0, %s69
      %s84 = sphi 0, %s70
      %s90 = sphi 0, %s92
      %s93 = sphi 0, %s90
      %s94 = sphi 0, %s93
      %s110 = sphi 0, %s94
    $region4: #{downsample_forward.5} parent=1 // loop_header_branch
      %15 = sbr.rel (%p13) target = $region8
    $region5: #{downsample_forward.5} parent=1 // loop_body
      %s17 = ssub.s32 %s12, 1
      %s18 = ssub.s32 %s12, 2
      %s19 = sadd.s32 %s12, 1
      %s20 = ssub.s32 %s12, %s19
      %p21 = scmp.eq.s32.totalorder %s20, 0
      %s23 = sadd.s32 %s22, 1
      %s24 = scalar_select %p21, %s22, %s23
      %p27 = pneg %p21
      %p28 = scmp.eq.s32.totalorder %s12, 1
      %p29 = por %p27, %p28
      %p30 = scmp.ne.s32.totalorder %s22, %s25
      %p31 = scmp.eq.s32.totalorder %s12, 0
      %p32 = por %p30, %p31
      %p33 = scmp.ne.s32.totalorder %s22, %s25
      %p34 = scmp.eq.s32.totalorder %s17, 1
      %p35 = por %p33, %p34
      %p36 = scmp.ne.s32.totalorder %s25, %s26
      %p37 = scmp.eq.s32.totalorder %s17, 0
      %p38 = por %p36, %p37
      %p39 = scmp.ne.s32.totalorder %s25, %s26
      %p40 = scmp.eq.s32.totalorder %s18, 1
      %p41 = por %p39, %p40
      %p43 = scmp.ne.s32.totalorder %s26, %s42
      %p44 = scmp.eq.s32.totalorder %s18, 0
      %p45 = por %p43, %p44
      %s47 = sadd.s32 %s46, 1
      %p50 = scmp.eq.s32.totalorder %s12, 1
      %p51 = scmp.ne.s32.totalorder %s46, %s48
      %p52 = scmp.eq.s32.totalorder %s12, 0
      %p53 = por %p51, %p52
      %p54 = scmp.ne.s32.totalorder %s46, %s48
      %p55 = scmp.eq.s32.totalorder %s17, 1
      %p56 = por %p54, %p55
      %p57 = scmp.ne.s32.totalorder %s48, %s49
      %p58 = scmp.eq.s32.totalorder %s17, 0
      %p59 = por %p57, %p58
      %p60 = scmp.ne.s32.totalorder %s48, %s49
      %p61 = scmp.eq.s32.totalorder %s18, 1
      %p62 = por %p60, %p61
      %p64 = scmp.ne.s32.totalorder %s49, %s63
      %p65 = scmp.eq.s32.totalorder %s18, 0
      %p66 = por %p64, %p65
      %s68 = sadd.s32 %s67, 1
      %p71 = scmp.eq.s32.totalorder %s12, 1
      %p72 = scmp.ne.s32.totalorder %s67, %s69
      %p73 = scmp.eq.s32.totalorder %s12, 0
      %p74 = por %p72, %p73
      %p75 = scmp.ne.s32.totalorder %s67, %s69
      %p76 = scmp.eq.s32.totalorder %s17, 1
      %p77 = por %p75, %p76
      %p78 = scmp.ne.s32.totalorder %s69, %s70
      %p79 = scmp.eq.s32.totalorder %s17, 0
      %p80 = por %p78, %p79
      %p81 = scmp.ne.s32.totalorder %s69, %s70
      %p82 = scmp.eq.s32.totalorder %s18, 1
      %p83 = por %p81, %p82
      %p85 = scmp.ne.s32.totalorder %s70, %s84
      %p86 = scmp.eq.s32.totalorder %s18, 0
      %p87 = por %p85, %p86
      %s88 = ssub.s32 %s12, %s19
      %p89 = scmp.eq.s32.totalorder %s88, 0
      %s91 = sadd.s32 %s90, 1
      %s92 = scalar_select %p89, %s90, %s91
      %p95 = pneg %p89
      %p96 = scmp.eq.s32.totalorder %s12, 1
      %p97 = por %p95, %p96
      %p98 = scmp.ne.s32.totalorder %s90, %s93
      %p99 = scmp.eq.s32.totalorder %s12, 0
      %p100 = por %p98, %p99
      %p101 = scmp.ne.s32.totalorder %s90, %s93
      %p102 = scmp.eq.s32.totalorder %s17, 1
      %p103 = por %p101, %p102
      %p104 = scmp.ne.s32.totalorder %s93, %s94
      %p105 = scmp.eq.s32.totalorder %s17, 0
      %p106 = por %p104, %p105
      %p107 = scmp.ne.s32.totalorder %s93, %s94
      %p108 = scmp.eq.s32.totalorder %s18, 1
      %p109 = por %p107, %p108
      %p111 = scmp.ne.s32.totalorder %s94, %s110
      %p112 = scmp.eq.s32.totalorder %s18, 0
      %p113 = por %p111, %p112
      %p114 = scmp.le.s32.totalorder 1, %s12
      %p115 = scmp.lt.s32.totalorder %s12, 3
      %p116 = pnand %p114, %p115
      %p117 = pneg %p116
      // Predicated region
      $region9: #{downsample_forward.5} parent=5 // pred_check
        _
      $region10: #{downsample_forward.5} parent=5 // pred_check_branch
        %119 = sbr.rel (%p116) target = $region12
      $region11: #{downsample_forward.5} parent=5 // pred_region
        %s120 = ssub.s32 %s12, 1
        // Predicated region
        $region13: #{downsample_forward.5} parent=11 // pred_check
          %p121 = pneg %p59
        $region14: #{downsample_forward.5} parent=11 // pred_check_branch
          %123 = sbr.rel (%p121) target = $region16
        $region15: #{downsample_forward.5} parent=11 // pred_region
          _
        $region16: #{downsample_forward.5} parent=11 // pred_fallthru
          _
        // Predicated region
        $region17: #{downsample_forward.5} parent=11 // pred_check
          %p124 = pneg %p80
        $region18: #{downsample_forward.5} parent=11 // pred_check_branch
          %126 = sbr.rel (%p124) target = $region20
        $region19: #{downsample_forward.5} parent=11 // pred_region
          _
        $region20: #{downsample_forward.5} parent=11 // pred_fallthru
          _
      $region12: #{downsample_forward.5} parent=5 // pred_fallthru
        _
      %p127 = scmp.lt.s32.totalorder %s12, 2
      // Predicated region
      $region21: #{downsample_forward.5} parent=5 // pred_check
        %p128 = pneg %p127
      $region22: #{downsample_forward.5} parent=5 // pred_check_branch
        %130 = sbr.rel (%p128) target = $region24
      $region23: #{downsample_forward.5} parent=5 // pred_region
        // Predicated region
        $region25: #{downsample_forward.5} parent=23 // pred_check
          %p131 = pneg %p32
        $region26: #{downsample_forward.5} parent=23 // pred_check_branch
          %133 = sbr.rel (%p131) target = $region28
        $region27: #{downsample_forward.5} parent=23 // pred_region
          %p134 = scmp.lt.s32.totalorder %s12, 1
          %s135 = scalar_select %p134, %s12, 1
          %s136 = smul.addr %s135, 8
          %s137 = scalar_lea.vmem %s0, %s136
        $region28: #{downsample_forward.5} parent=23 // pred_fallthru
          _
      $region24: #{downsample_forward.5} parent=5 // pred_fallthru
        _
      %p138 = scmp.le.s32.totalorder 1, %s12
      %p139 = scmp.lt.s32.totalorder %s12, 3
      %p140 = pnand %p138, %p139
      %p141 = pneg %p140
      // Predicated region
      $region29: #{downsample_forward.5} parent=5 // pred_check
        _
      $region30: #{downsample_forward.5} parent=5 // pred_check_branch
        %143 = sbr.rel (%p140) target = $region32
      $region31: #{downsample_forward.5} parent=5 // pred_region
        %s144 = ssub.s32 %s12, 1
        %p145 = scmp.lt.s32.totalorder %s17, 1
        %s146 = scalar_select %p145, %s17, 1
        %s147 = smul.addr %s146, 8
        %s148 = scalar_lea.vmem %s0, %s147
        %p149 = pneg %p38
        %p150 = pneg %p35
        %p151 = pneg %p59
        %p152 = pneg %p56
        %p153 = pneg %p80
        %p154 = pneg %p77
        %p155 = pneg %p106
        %p156 = pneg %p103
        %s157 = sand.u32 %s93, 1
        %s158 = scalar_lea.sflag [#allocation3], %s157
        %s159 = sand.u32 %s93, 1
        %s160 = smul.addr %s159, 8
        %s161 = scalar_lea.vmem [#allocation2], %s160
        %p162 = scmp.lt.s32.totalorder %s17, 1
        %s163 = scalar_select %p162, %s17, 1
        %s164 = smul.addr %s163, 8
        %s165 = scalar_lea.vmem %s0, %s164
        %v166 = vld [vmem:[%s165] sm:$0xff]
        %v167 = vld [vmem:[%s1] sm:$0x1]
        %v169 = vlaneseq
        %v170 = vshrl.u32 %v169, 7
        %v171 = vsub.s32 0, %v170
        %v172 = vrot.slane %v167, %v171
        %v174 = vmul.f32 %v166, %v172
        %v175 = vld [vmem:[%s2] sm:$0x1]
        %v177 = vlaneseq
        %v178 = vshrl.u32 %v177, 7
        %v179 = vsub.s32 0, %v178
        %v180 = vrot.slane %v175, %v179
        %v182 = vadd.f32 %v174, %v180
        %v183 = vmax.f32 %v182, 0.0
        %184 = vxpose.xlu0.b32.start [1/16] %v183, 128
        %185 = vxpose.xlu0.b32.cont [2/16] 0.0, 128
        %186 = vxpose.xlu0.b32.cont [3/16] 0.0, 128
        %187 = vxpose.xlu0.b32.cont [4/16] 0.0, 128
        %188 = vxpose.xlu0.b32.cont [5/16] 0.0, 128
        %189 = vxpose.xlu0.b32.cont [6/16] 0.0, 128
        %190 = vxpose.xlu0.b32.cont [7/16] 0.0, 128
        %191 = vxpose.xlu0.b32.cont [8/16] 0.0, 128
        %192 = vxpose.xlu0.b32.cont [9/16] 0.0, 128
        %193 = vxpose.xlu0.b32.cont [10/16] 0.0, 128
        %194 = vxpose.xlu0.b32.cont [11/16] 0.0, 128
        %195 = vxpose.xlu0.b32.cont [12/16] 0.0, 128
        %196 = vxpose.xlu0.b32.cont [13/16] 0.0, 128
        %197 = vxpose.xlu0.b32.cont [14/16] 0.0, 128
        %198 = vxpose.xlu0.b32.cont [15/16] 0.0, 128
        %199 = vxpose.xlu0.b32.end [16/16] 0.0, 128
        %v200 = vpop.trf.xlu0
        %v201 = vpop.trf.xlu0
        %v202 = vpop.trf.xlu0
        %v203 = vpop.trf.xlu0
        %v204 = vpop.trf.xlu0
        %v205 = vpop.trf.xlu0
        %v206 = vpop.trf.xlu0
        %v207 = vpop.trf.xlu0
        %v208 = vpop.trf.xlu0
        %v209 = vpop.trf.xlu0
        %v210 = vpop.trf.xlu0
        %v211 = vpop.trf.xlu0
        %v212 = vpop.trf.xlu0
        %v213 = vpop.trf.xlu0
        %v214 = vpop.trf.xlu0
        %v215 = vpop.trf.xlu0
        %vm216 = vcmask 64512
        %217 = vst.msk [vmem:[%s161] sm:$0xff] %vm216, %v200
        %s218 = sand.u32 %s93, 1
        %s219 = scalar_lea.sflag [#allocation3], %s218
        %s220 = sand.u32 %s93, 1
        %s221 = smul.addr %s220, 8
        %s222 = scalar_lea.vmem [#allocation2], %s221
        // Predicated region
        $region33: #{downsample_forward.5} parent=31 // pred_check
          %p223 = pneg %p103
        $region34: #{downsample_forward.5} parent=31 // pred_check_branch
          %225 = sbr.rel (%p223) target = $region36
        $region35: #{downsample_forward.5} parent=31 // pred_region
          %s227 = ssub.s32 128, 128
          %228 = vsyncadd %s219, %s227
          %s229 = smul.addr %s17, 128
          %s230 = scalar_lea.hbm %s3, %s229
          %s232 = sshll.u32 %s222, 4
          %s233 = int_to_ptr.vmem [resolvable:$true] %s232
          %235 = dma.vmem_to_hbm [thread:$0]  %s233, 128, %s230, %s219
        $region36: #{downsample_forward.5} parent=31 // pred_fallthru
          _
      $region32: #{downsample_forward.5} parent=5 // pred_fallthru
        _
      %p236 = scmp.le.s32.totalorder 2, %s12
      // Predicated region
      $region37: #{downsample_forward.5} parent=5 // pred_check
        %p237 = pneg %p236
      $region38: #{downsample_forward.5} parent=5 // pred_check_branch
        %239 = sbr.rel (%p237) target = $region40
      $region39: #{downsample_forward.5} parent=5 // pred_region
        %s240 = ssub.s32 %s12, 2
        // Predicated region
        $region41: #{downsample_forward.5} parent=39 // pred_check
          %p241 = pneg %p109
        $region42: #{downsample_forward.5} parent=39 // pred_check_branch
          %243 = sbr.rel (%p241) target = $region44
        $region43: #{downsample_forward.5} parent=39 // pred_region
          %s244 = sand.u32 %s94, 1
          %s245 = scalar_lea.sflag [#allocation3], %s244
          %s246 = sand.u32 %s94, 1
          %s247 = smul.addr %s246, 8
          %s248 = scalar_lea.vmem [#allocation2], %s247
          %249 = dma.done %s245, 128
        $region44: #{downsample_forward.5} parent=39 // pred_fallthru
          _
      $region40: #{downsample_forward.5} parent=5 // pred_fallthru
        _
    $region6: #{downsample_forward.5} parent=1 // loop_footer
      %s16 = sadd.s32 1, %s12
    $region7: #{downsample_forward.5} parent=1 // loop_footer_branch
      %11 = sbr.rel target = $region3
    $region8: #{downsample_forward.5} parent=1 // loop_exit
      _
    %250 = vsyncpa [#allocation3], 1
    %s251 = scalar_lea.sflag [#allocation3], 1
    %252 = vsyncpa %s251, 1

// kernel: downsample_forward.3
$region0: #{downsample_forward.3}
  #allocation0 [shape = 'u32[]', space=smem, size = 0x4, offset = 0x4, fixed_abs, tag = 'smem constant byte address 0x4 - core index']
  #allocation1 [shape = 'u32[144,128]{1,0:T(1,128)}', space=vmem, size = 0x12000, scoped, tag = 'internal scratch']
  %s0 = inlined_call_operand.vmem [shape: f32[2,4,16], index: 0, kind: input, shape index: {}]
  %s1 = inlined_call_operand.vmem [shape: f32[12,8], index: 1, kind: input, shape index: {}]
  %s2 = inlined_call_operand.vmem [shape: f32[2,8,8], index: 2, kind: output, shape index: {0}]
  %s3 = inlined_call_operand.vmem [shape: f32[2,2,8], index: 3, kind: output, shape index: {1}]
  %4 = xla_tuple %s2, %s3
  %s5 = sld [smem:[#allocation0]]
  $region49: #{downsample_forward.3} parent=0
    _
  %s7 = ssub.s32 1, %s5
  %s8 = scalar_select 0, %s7, %s5
  loop: start=0, step=1, limit=4
  $region2: #{downsample_forward.3} parent=0 // loop_pre_header
    _
  $region3: #{downsample_forward.3} parent=0 // loop_header
    %s10 = sphi 0, %s14
    %p11 = scmp.ge.s32.totalorder %s10, 4
    %s20 = sphi 0, %s22
    %s23 = sphi 0, %s20
    %s24 = sphi 0, %s23
    %s40 = sphi 0, %s24
    %s44 = sphi 0, %s44
    %s46 = sphi 0, %s44
    %s47 = sphi 0, %s46
    %s61 = sphi 0, %s47
    %s67 = sphi 0, %s69
    %s70 = sphi 0, %s67
    %s71 = sphi 0, %s70
    %s87 = sphi 0, %s71
    %s93 = sphi 0, %s95
    %s96 = sphi 0, %s93
    %s97 = sphi 0, %s96
    %s113 = sphi 0, %s97
  $region4: #{downsample_forward.3} parent=0 // loop_header_branch
    %13 = sbr.rel (%p11) target = $region8
  $region5: #{downsample_forward.3} parent=0 // loop_body
    %s15 = ssub.s32 %s10, 1
    %s16 = ssub.s32 %s10, 2
    %s17 = sadd.s32 %s10, 1
    %s18 = ssub.s32 %s10, %s17
    %p19 = scmp.eq.s32.totalorder %s18, 0
    %s21 = sadd.s32 %s20, 1
    %s22 = scalar_select %p19, %s20, %s21
    %p25 = pneg %p19
    %p26 = scmp.eq.s32.totalorder %s10, 1
    %p27 = por %p25, %p26
    %p28 = scmp.ne.s32.totalorder %s20, %s23
    %p29 = scmp.eq.s32.totalorder %s10, 0
    %p30 = por %p28, %p29
    %p31 = scmp.ne.s32.totalorder %s20, %s23
    %p32 = scmp.eq.s32.totalorder %s15, 1
    %p33 = por %p31, %p32
    %p34 = scmp.ne.s32.totalorder %s23, %s24
    %p35 = scmp.eq.s32.totalorder %s15, 0
    %p36 = por %p34, %p35
    %p37 = scmp.ne.s32.totalorder %s23, %s24
    %p38 = scmp.eq.s32.totalorder %s16, 1
    %p39 = por %p37, %p38
    %p41 = scmp.ne.s32.totalorder %s24, %s40
    %p42 = scmp.eq.s32.totalorder %s16, 0
    %p43 = por %p41, %p42
    %s45 = sadd.s32 %s44, 1
    %p48 = scmp.eq.s32.totalorder %s10, 1
    %p49 = scmp.ne.s32.totalorder %s44, %s46
    %p50 = scmp.eq.s32.totalorder %s10, 0
    %p51 = por %p49, %p50
    %p52 = scmp.ne.s32.totalorder %s44, %s46
    %p53 = scmp.eq.s32.totalorder %s15, 1
    %p54 = por %p52, %p53
    %p55 = scmp.ne.s32.totalorder %s46, %s47
    %p56 = scmp.eq.s32.totalorder %s15, 0
    %p57 = por %p55, %p56
    %p58 = scmp.ne.s32.totalorder %s46, %s47
    %p59 = scmp.eq.s32.totalorder %s16, 1
    %p60 = por %p58, %p59
    %p62 = scmp.ne.s32.totalorder %s47, %s61
    %p63 = scmp.eq.s32.totalorder %s16, 0
    %p64 = por %p62, %p63
    %s65 = ssub.s32 %s10, %s17
    %p66 = scmp.eq.s32.totalorder %s65, 0
    %s68 = sadd.s32 %s67, 1
    %s69 = scalar_select %p66, %s67, %s68
    %p72 = pneg %p66
    %p73 = scmp.eq.s32.totalorder %s10, 1
    %p74 = por %p72, %p73
    %p75 = scmp.ne.s32.totalorder %s67, %s70
    %p76 = scmp.eq.s32.totalorder %s10, 0
    %p77 = por %p75, %p76
    %p78 = scmp.ne.s32.totalorder %s67, %s70
    %p79 = scmp.eq.s32.totalorder %s15, 1
    %p80 = por %p78, %p79
    %p81 = scmp.ne.s32.totalorder %s70, %s71
    %p82 = scmp.eq.s32.totalorder %s15, 0
    %p83 = por %p81, %p82
    %p84 = scmp.ne.s32.totalorder %s70, %s71
    %p85 = scmp.eq.s32.totalorder %s16, 1
    %p86 = por %p84, %p85
    %p88 = scmp.ne.s32.totalorder %s71, %s87
    %p89 = scmp.eq.s32.totalorder %s16, 0
    %p90 = por %p88, %p89
    %s91 = ssub.s32 %s10, %s17
    %p92 = scmp.eq.s32.totalorder %s91, 0
    %s94 = sadd.s32 %s93, 1
    %s95 = scalar_select %p92, %s93, %s94
    %p98 = pneg %p92
    %p99 = scmp.eq.s32.totalorder %s10, 1
    %p100 = por %p98, %p99
    %p101 = scmp.ne.s32.totalorder %s93, %s96
    %p102 = scmp.eq.s32.totalorder %s10, 0
    %p103 = por %p101, %p102
    %p104 = scmp.ne.s32.totalorder %s93, %s96
    %p105 = scmp.eq.s32.totalorder %s15, 1
    %p106 = por %p104, %p105
    %p107 = scmp.ne.s32.totalorder %s96, %s97
    %p108 = scmp.eq.s32.totalorder %s15, 0
    %p109 = por %p107, %p108
    %p110 = scmp.ne.s32.totalorder %s96, %s97
    %p111 = scmp.eq.s32.totalorder %s16, 1
    %p112 = por %p110, %p111
    %p114 = scmp.ne.s32.totalorder %s97, %s113
    %p115 = scmp.eq.s32.totalorder %s16, 0
    %p116 = por %p114, %p115
    %p117 = scmp.le.s32.totalorder 1, %s10
    %p118 = scmp.lt.s32.totalorder %s10, 3
    %p119 = pnand %p117, %p118
    %p120 = pneg %p119
    // Predicated region
    $region9: #{downsample_forward.3} parent=5 // pred_check
      _
    $region10: #{downsample_forward.3} parent=5 // pred_check_branch
      %122 = sbr.rel (%p119) target = $region12
    $region11: #{downsample_forward.3} parent=5 // pred_region
      %s123 = ssub.s32 %s10, 1
      // Predicated region
      $region13: #{downsample_forward.3} parent=11 // pred_check
        %p124 = pneg %p57
      $region14: #{downsample_forward.3} parent=11 // pred_check_branch
        %126 = sbr.rel (%p124) target = $region16
      $region15: #{downsample_forward.3} parent=11 // pred_region
        _
      $region16: #{downsample_forward.3} parent=11 // pred_fallthru
        _
    $region12: #{downsample_forward.3} parent=5 // pred_fallthru
      _
    %p127 = scmp.lt.s32.totalorder %s10, 2
    // Predicated region
    $region17: #{downsample_forward.3} parent=5 // pred_check
      %p128 = pneg %p127
    $region18: #{downsample_forward.3} parent=5 // pred_check_branch
      %130 = sbr.rel (%p128) target = $region20
    $region19: #{downsample_forward.3} parent=5 // pred_region
      // Predicated region
      $region21: #{downsample_forward.3} parent=19 // pred_check
        %p131 = pneg %p30
      $region22: #{downsample_forward.3} parent=19 // pred_check_branch
        %133 = sbr.rel (%p131) target = $region24
      $region23: #{downsample_forward.3} parent=19 // pred_region
        %p134 = scmp.lt.s32.totalorder %s10, 1
        %s135 = scalar_select %p134, %s10, 1
        %s136 = smul.addr %s135, 4
        %s137 = scalar_lea.vmem %s0, %s136
      $region24: #{downsample_forward.3} parent=19 // pred_fallthru
        _
    $region20: #{downsample_forward.3} parent=5 // pred_fallthru
      _
    %p138 = scmp.le.s32.totalorder 1, %s10
    %p139 = scmp.lt.s32.totalorder %s10, 3
    %p140 = pnand %p138, %p139
    %p141 = pneg %p140
    // Predicated region
    $region25: #{downsample_forward.3} parent=5 // pred_check
      _
    $region26: #{downsample_forward.3} parent=5 // pred_check_branch
      %143 = sbr.rel (%p140) target = $region28
    $region27: #{downsample_forward.3} parent=5 // pred_region
      %s144 = ssub.s32 %s10, 1
      %p145 = scmp.lt.s32.totalorder %s15, 1
      %s146 = scalar_select %p145, %s15, 1
      %s147 = smul.addr %s146, 4
      %s148 = scalar_lea.vmem %s0, %s147
      %p149 = pneg %p36
      %p150 = pneg %p33
      %p151 = pneg %p57
      %p152 = pneg %p54
      %p153 = pneg %p83
      %p154 = pneg %p80
      %p155 = scmp.lt.s32.totalorder %s15, 1
      %s156 = scalar_select %p155, %s15, 1
      %s157 = smul.addr %s156, 8
      %s158 = scalar_lea.vmem %s2, %s157
      %p159 = pneg %p109
      %p160 = pneg %p106
      %p161 = scmp.lt.s32.totalorder %s15, 1
      %s162 = scalar_select %p161, %s15, 1
      %s163 = smul.addr %s162, 2
      %s164 = scalar_lea.vmem %s3, %s163
      %p165 = scmp.lt.s32.totalorder %s15, 1
      %s166 = scalar_select %p165, %s15, 1
      %s167 = smul.addr %s166, 4
      %s168 = scalar_lea.vmem %s0, %s167
      %p169 = scmp.lt.s32.totalorder %s15, 1
      %s170 = scalar_select %p169, %s15, 1
      %s171 = smul.addr %s170, 8
      %s172 = scalar_lea.vmem %s2, %s171
      %p173 = scmp.lt.s32.totalorder %s15, 1
      %s174 = scalar_select %p173, %s15, 1
      %s175 = smul.addr %s174, 2
      %s176 = scalar_lea.vmem %s3, %s175
      %v177 = vld [vmem:[%s168] sm:$0xf]
      %178 = vxpose.xlu0.b32.start [1/16] %v177, 128
      %179 = vxpose.xlu0.b32.cont [2/16] 0.0, 128
      %180 = vxpose.xlu0.b32.cont [3/16] 0.0, 128
      %181 = vxpose.xlu0.b32.cont [4/16] 0.0, 128
      %182 = vxpose.xlu0.b32.cont [5/16] 0.0, 128
      %183 = vxpose.xlu0.b32.cont [6/16] 0.0, 128
      %184 = vxpose.xlu0.b32.cont [7/16] 0.0, 128
      %185 = vxpose.xlu0.b32.cont [8/16] 0.0, 128
      %186 = vxpose.xlu0.b32.cont [9/16] 0.0, 128
      %187 = vxpose.xlu0.b32.cont [10/16] 0.0, 128
      %188 = vxpose.xlu0.b32.cont [11/16] 0.0, 128
      %189 = vxpose.xlu0.b32.cont [12/16] 0.0, 128
      %190 = vxpose.xlu0.b32.cont [13/16] 0.0, 128
      %191 = vxpose.xlu0.b32.cont [14/16] 0.0, 128
      %192 = vxpose.xlu0.b32.cont [15/16] 0.0, 128
      %193 = vxpose.xlu0.b32.end [16/16] 0.0, 128
      %v194 = vpop.trf.xlu0
      %v195 = vpop.trf.xlu0
      %v196 = vpop.trf.xlu0
      %v197 = vpop.trf.xlu0
      %v198 = vpop.trf.xlu0
      %v199 = vpop.trf.xlu0
      %v200 = vpop.trf.xlu0
      %v201 = vpop.trf.xlu0
      %v202 = vpop.trf.xlu0
      %v203 = vpop.trf.xlu0
      %v204 = vpop.trf.xlu0
      %v205 = vpop.trf.xlu0
      %v206 = vpop.trf.xlu0
      %v207 = vpop.trf.xlu0
      %v208 = vpop.trf.xlu0
      %v209 = vpop.trf.xlu0
      %v212 = vcombine.high %v194, %v194
      %v214 = vunpack.c.l.s4 1983009808
      %v215 = vunpack.c.0.s8 %v214
      %v216 = vlaneseq
      %v217 = vshrl.u32 %v216, 7
      %v218 = vsub.s32 %v215, %v217
      %v219 = vrot.slane %v194, %v218
      %v221 = vunpack.c.l.s4 1983009808
      %v222 = vunpack.c.0.s8 %v221
      %v223 = vlaneseq
      %v224 = vshrl.u32 %v223, 7
      %v225 = vsub.s32 %v222, %v224
      %v226 = vrot.slane %v212, %v225
      %v227 = vcombine.high %v219, %v219
      %v228 = vcombine.high %v226, %v226
      %v229 = vcombine.high %v195, %v195
      %v231 = vunpack.c.l.s4 1983009808
      %v232 = vunpack.c.0.s8 %v231
      %v233 = vlaneseq
      %v234 = vshrl.u32 %v233, 7
      %v235 = vsub.s32 %v232, %v234
      %v236 = vrot.slane %v195, %v235
      %v238 = vunpack.c.l.s4 1983009808
      %v239 = vunpack.c.0.s8 %v238
      %v240 = vlaneseq
      %v241 = vshrl.u32 %v240, 7
      %v242 = vsub.s32 %v239, %v241
      %v243 = vrot.slane %v229, %v242
      %v244 = vcombine.high %v236, %v236
      %v245 = vcombine.high %v243, %v243
      %vm254 = vcmask 25600
      %v255 = vsel %vm254, %v219, -inf
      %v256 = vrot.slane %v255, 4
      %v257 = vmax.f32 %v255, %v256
      %v258 = vrot.slane %v257, 2
      %v259 = vmax.f32 %v257, %v258
      %v260 = vrot.slane %v259, 1
      %v261 = vmax.f32 %v259, %v260
      %v262 = vsel %vm254, %v227, -inf
      %v263 = vrot.slane %v262, 4
      %v264 = vmax.f32 %v262, %v263
      %v265 = vrot.slane %v264, 2
      %v266 = vmax.f32 %v264, %v265
      %v267 = vrot.slane %v266, 1
      %v268 = vmax.f32 %v266, %v267
      %v269 = vsel %vm254, %v226, -inf
      %v270 = vrot.slane %v269, 4
      %v271 = vmax.f32 %v269, %v270
      %v272 = vrot.slane %v271, 2
      %v273 = vmax.f32 %v271, %v272
      %v274 = vrot.slane %v273, 1
      %v275 = vmax.f32 %v273, %v274
      %v276 = vsel %vm254, %v228, -inf
      %v277 = vrot.slane %v276, 4
      %v278 = vmax.f32 %v276, %v277
      %v279 = vrot.slane %v278, 2
      %v280 = vmax.f32 %v278, %v279
      %v281 = vrot.slane %v280, 1
      %v282 = vmax.f32 %v280, %v281
      %v283 = vsel %vm254, %v236, -inf
      %v284 = vrot.slane %v283, 4
      %v285 = vmax.f32 %v283, %v284
      %v286 = vrot.slane %v285, 2
      %v287 = vmax.f32 %v285, %v286
      %v288 = vrot.slane %v287, 1
      %v289 = vmax.f32 %v287, %v288
      %v290 = vsel %vm254, %v244, -inf
      %v291 = vrot.slane %v290, 4
      %v292 = vmax.f32 %v290, %v291
      %v293 = vrot.slane %v292, 2
      %v294 = vmax.f32 %v292, %v293
      %v295 = vrot.slane %v294, 1
      %v296 = vmax.f32 %v294, %v295
      %v297 = vsel %vm254, %v243, -inf
      %v298 = vrot.slane %v297, 4
      %v299 = vmax.f32 %v297, %v298
      %v300 = vrot.slane %v299, 2
      %v301 = vmax.f32 %v299, %v300
      %v302 = vrot.slane %v301, 1
      %v303 = vmax.f32 %v301, %v302
      %v304 = vsel %vm254, %v245, -inf
      %v305 = vrot.slane %v304, 4
      %v306 = vmax.f32 %v304, %v305
      %v307 = vrot.slane %v306, 2
      %v308 = vmax.f32 %v306, %v307
      %v309 = vrot.slane %v308, 1
      %v310 = vmax.f32 %v308, %v309
      %v311 = vld [vmem:[%s1] sm:$0xff]
      %v312 = vld [vmem:[%s1 + $0x8] sm:$0xf]
      %vm320 = vcmask 1042434
      %v321 = vsel %vm320, %v268, %v261
      %vm322 = vcmask 1043459
      %v323 = vsel %vm322, %v275, %v321
      %vm324 = vcmask 1044484
      %v325 = vsel %vm324, %v282, %v323
      %vm326 = vcmask 1045509
      %v327 = vsel %vm326, %v289, %v325
      %vm328 = vcmask 1046534
      %v329 = vsel %vm328, %v296, %v327
      %vm330 = vcmask 1047559
      %v331 = vsel %vm330, %v303, %v329
      %vm333 = vcmask 1040384
      %v334 = vsel %vm333, 0.0, %v331
      %vm336 = vcmask 1041409
      %v337 = vsel %vm336, %v275, %v268
      %v338 = vsel %vm320, %v282, %v337
      %v339 = vsel %vm322, %v289, %v338
      %v340 = vsel %vm324, %v296, %v339
      %v341 = vsel %vm326, %v303, %v340
      %v342 = vsel %vm328, %v310, %v341
      %vm344 = vcmask 1046528
      %v345 = vsel %vm344, %v342, 0.0
      %v346 = vsel %vm336, %v268, %v261
      %v347 = vsel %vm320, %v275, %v346
      %v348 = vsel %vm322, %v282, %v347
      %v349 = vsel %vm324, %v289, %v348
      %v350 = vsel %vm326, %v296, %v349
      %v351 = vsel %vm328, %v303, %v350
      %v352 = vsel %vm330, %v310, %v351
      %353 = vrot.lane.b32.xlu0 %v352, 4
      %v354 = vpop.permute.xlu0 %353
      %357 = vrot.lane.b32.xlu0 %v345, 8
      %v358 = vpop.permute.xlu0 %357
      %vm360 = vcmask 31744
      %v361 = vsel %vm360, %v334, %v354
      %vm362 = vcmask 64512
      %v363 = vsel %vm362, %v361, %v358
      %vm364 = vcmask 97280
      %v366 = vsel %vm364, %v363, 0
      %vm368 = vcmask 1043456
      %v370 = vsel %vm368, %v312, 0
      %372 = vmatprep.subr.mxu0 0.0
      %373 = vmatpush1.msra.mxu0 %v311
      %374 = vmatprep.subr.mxu0 0.0
      %375 = vmatpush1.msra.mxu0 %v370
      %376 = vmatprep.subr.mxu0 0.0
      %377 = vmatpush1.msra.mxu0 0.0
      %378 = vmatprep.subr.mxu0 0.0
      %379 = vmatpush1.msra.mxu0 0.0
      %380 = vmatprep.subr.mxu0 0.0
      %381 = vmatpush1.msra.mxu0 0.0
      %382 = vmatprep.subr.mxu0 0.0
      %383 = vmatpush1.msra.mxu0 0.0
      %384 = vmatprep.subr.mxu0 0.0
      %385 = vmatpush1.msra.mxu0 0.0
      %386 = vmatprep.subr.mxu0 0.0
      %387 = vmatpush1.msra.mxu0 0.0
      %388 = vmatprep.subr.mxu0 0.0
      %389 = vmatpush1.msra.mxu0 0.0
      %390 = vmatprep.subr.mxu0 0.0
      %391 = vmatpush1.msra.mxu0 0.0
      %392 = vmatprep.subr.mxu0 0.0
      %393 = vmatpush1.msra.mxu0 0.0
      %394 = vmatprep.subr.mxu0 0.0
      %395 = vmatpush1.msra.mxu0 0.0
      %396 = vmatprep.subr.mxu0 0.0
      %397 = vmatpush1.msra.mxu0 0.0
      %398 = vmatprep.subr.mxu0 0.0
      %399 = vmatpush1.msra.mxu0 0.0
      %400 = vmatprep.subr.mxu0 0.0
      %401 = vmatpush1.msra.mxu0 0.0
      %402 = vmatprep.subr.mxu0 0.0
      %403 = vmatpush1.msra.mxu0 0.0
      %404 = vmatprep.subr.mxu0 0.0
      %405 = vmatpush1.msra.mxu0 0.0
      %406 = vmatprep.subr.mxu0 0.0
      %407 = vmatpush1.msra.mxu0 0.0
      %408 = vmatprep.subr.mxu0 0.0
      %409 = vmatpush1.msra.mxu0 0.0
      %410 = vmatprep.subr.mxu0 0.0
      %411 = vmatpush1.msra.mxu0 0.0
      %412 = vmatprep.subr.mxu0 0.0
      %413 = vmatpush1.msra.mxu0 0.0
      %414 = vmatprep.subr.mxu0 0.0
      %415 = vmatpush1.msra.mxu0 0.0
      %416 = vmatprep.subr.mxu0 0.0
      %417 = vmatpush1.msra.mxu0 0.0
      %418 = vmatprep.subr.mxu0 0.0
      %419 = vmatpush1.msra.mxu0 0.0
      %420 = vmatprep.subr.mxu0 0.0
      %421 = vmatpush1.msra.mxu0 0.0
      %422 = vmatprep.subr.mxu0 0.0
      %423 = vmatpush1.msra.mxu0 0.0
      %424 = vmatprep.subr.mxu0 0.0
      %425 = vmatpush1.msra.mxu0 0.0
      %426 = vmatprep.subr.mxu0 0.0
      %427 = vmatpush1.msra.mxu0 0.0
      %428 = vmatprep.subr.mxu0 0.0
      %429 = vmatpush1.msra.mxu0 0.0
      %430 = vmatprep.subr.mxu0 0.0
      %431 = vmatpush1.msra.mxu0 0.0
      %432 = vmatprep.subr.mxu0 0.0
      %433 = vmatpush1.msra.mxu0 0.0
      %434 = vmatprep.subr.mxu0 0.0
      %435 = vmatpush1.msra.mxu0 0.0
      %436 = vmatprep.mubr.f32.mxu0 0.0
      %437 = vmatmul.mubr.f32.gmra.mrb[0].mxu0 %v366
      %v438 = vpop.f32.mrb[0].mxu0
      %v439 = vadd.f32 0.0, %v438
      %v440 = vpop.f32.mrb[0].mxu0
      %441 = vdwg.mxu0
      %442 = vst.msk [vmem:[%s172] sm:$0xff] %vm362, %v439
      %v443 = vsel %vm362, %v439, 0.0
      %v444 = vrot.slane %v443, 4
      %v445 = vadd.f32 %v443, %v444
      %v446 = vrot.slane %v445, 2
      %v447 = vadd.f32 %v445, %v446
      %v448 = vrot.slane %v447, 1
      %v449 = vadd.f32 %v447, %v448
      %v450 = vmul.f32 %v439, %v439
      %v451 = vsel %vm362, %v450, 0.0
      %v452 = vrot.slane %v451, 4
      %v453 = vadd.f32 %v451, %v452
      %v454 = vrot.slane %v453, 2
      %v455 = vadd.f32 %v453, %v454
      %v456 = vrot.slane %v455, 1
      %v457 = vadd.f32 %v455, %v456
      %v458 = vsel %vm333, %v449, %v457
      %vm459 = vcmask 58368
      %460 = vst.msk [vmem:[%s176] sm:$0x3] %vm459, %v458
      %p461 = scmp.lt.s32.totalorder %s15, 1
      %s462 = scalar_select %p461, %s15, 1
      %s463 = smul.addr %s462, 8
      %s464 = scalar_lea.vmem %s2, %s463
      %p465 = scmp.lt.s32.totalorder %s15, 1
      %s466 = scalar_select %p465, %s15, 1
      %s467 = smul.addr %s466, 2
      %s468 = scalar_lea.vmem %s3, %s467
      // Predicated region
      $region29: #{downsample_forward.3} parent=27 // pred_check
        %p469 = pneg %p80
      $region30: #{downsample_forward.3} parent=27 // pred_check_branch
        %471 = sbr.rel (%p469) target = $region32
      $region31: #{downsample_forward.3} parent=27 // pred_region
        _
      $region32: #{downsample_forward.3} parent=27 // pred_fallthru
        _
      // Predicated region
      $region33: #{downsample_forward.3} parent=27 // pred_check
        %p472 = pneg %p106
      $region34: #{downsample_forward.3} parent=27 // pred_check_branch
        %474 = sbr.rel (%p472) target = $region36
      $region35: #{downsample_forward.3} parent=27 // pred_region
        _
      $region36: #{downsample_forward.3} parent=27 // pred_fallthru
        _
    $region28: #{downsample_forward.3} parent=5 // pred_fallthru
      _
    %p475 = scmp.le.s32.totalorder 2, %s10
    // Predicated region
    $region37: #{downsample_forward.3} parent=5 // pred_check
      %p476 = pneg %p475
    $region38: #{downsample_forward.3} parent=5 // pred_check_branch
      %478 = sbr.rel (%p476) target = $region40
    $region39: #{downsample_forward.3} parent=5 // pred_region
      %s479 = ssub.s32 %s10, 2
      // Predicated region
      $region41: #{downsample_forward.3} parent=39 // pred_check
        %p480 = pneg %p86
      $region42: #{downsample_forward.3} parent=39 // pred_check_branch
        %482 = sbr.rel (%p480) target = $region44
      $region43: #{downsample_forward.3} parent=39 // pred_region
        %p483 = scmp.lt.s32.totalorder %s16, 1
        %s484 = scalar_select %p483, %s16, 1
        %s485 = smul.addr %s484, 8
        %s486 = scalar_lea.vmem %s2, %s485
      $region44: #{downsample_forward.3} parent=39 // pred_fallthru
        _
      // Predicated region
      $region45: #{downsample_forward.3} parent=39 // pred_check
        %p487 = pneg %p112
      $region46: #{downsample_forward.3} parent=39 // pred_check_branch
        %489 = sbr.rel (%p487) target = $region48
      $region47: #{downsample_forward.3} parent=39 // pred_region
        %p490 = scmp.lt.s32.totalorder %s16, 1
        %s491 = scalar_select %p490, %s16, 1
        %s492 = smul.addr %s491, 2
        %s493 = scalar_lea.vmem %s3, %s492
      $region48: #{downsample_forward.3} parent=39 // pred_fallthru
        _
    $region40: #{downsample_forward.3} parent=5 // pred_fallthru
      _
  $region6: #{downsample_forward.3} parent=0 // loop_footer
    %s14 = sadd.s32 1, %s10
  $region7: #{downsample_forward.3} parent=0 // loop_footer_branch
    %9 = sbr.rel target = $region3
  $region8: #{downsample_forward.3} parent=0 // loop_exit
    _

</llo_original>
